<compile_context>
chip_gen: v6e
topology: v6e:2x2x1
jax: 0.10.0
libtpu: 0.0.40
codegen_flags: <defaults>
</compile_context>

<pallas_src>
import jax
import jax.numpy as jnp
from jax import lax
from jax.experimental import pallas as pl
from jax.experimental.pallas import tpu as pltpu


def _round_up(n, m):
    return ((n + m - 1) // m) * m


def _monophonic_kernel_exact(x_ref, o_ref):
    # Block: (rows, P). Exact torch tie-break: FIRST maximal index wins.
    x = x_ref[...]
    p = x.shape[-1]

    # max over the pitch axis (original dim=2, the 128-lane axis)
    m = jnp.max(x, axis=-1, keepdims=True)

    # first maximal index: mask non-max lanes with sentinel P, then lane-min
    idx = lax.broadcasted_iota(jnp.int32, x.shape, dimension=x.ndim - 1)
    masked_idx = jnp.where(x == m, idx, p)
    first_max = jnp.min(masked_idx, axis=-1, keepdims=True)

    # hard one-hot (scatter of 1.0 at argmax); cast is free VPU filler
    o_ref[...] = (idx == first_max).astype(o_ref.dtype)


def _monophonic_kernel_anymax(x_ref, o_ref):
    # Single lane-reduce variant (half the XLU work; useful on v7x where HBM is
    # fast enough that two lane reduces per vreg can become the bottleneck).
    # NOTE: on exact ties multiple lanes are set (ties are NOT measure-zero for
    # bf16/quantized inputs) -> keep exact_ties=True there.
    x = x_ref[...]
    m = jnp.max(x, axis=-1, keepdims=True)
    o_ref[...] = (x == m).astype(o_ref.dtype)


def monophonic_layer(x, *, row_tile=2048, exact_ties=True, out_dtype=None):
    """Pallas equivalent of MonophonicLayer.forward (STE forward pass).

    x: (B, T, P) float array. Returns a one-hot along the last axis (dim=2).
    row_tile:   max rows of the flattened (B*T, P) array processed per step.
    exact_ties: True  -> torch-exact first-max tie-break (two lane reduces)
                False -> any-max tie-break (one lane reduce; v7x XLU relief)
    out_dtype:  output dtype (default x.dtype for torch parity; bf16/int8 are
                exact for 0/1 and cut store traffic on this mem-bound op).
    """
    B, T, P = x.shape
    rows = B * T
    out_dtype = x.dtype if out_dtype is None else out_dtype

    x2 = x.reshape(rows, P)  # view-like reshape, no copy

    # Lane-dense pitch axis: pad to a multiple of 128 with -inf (argmax-safe)
    # so stores are unmasked full-lane vst. No-op when P % 128 == 0.
    P_pad = _round_up(P, 128)
    if P_pad != P:
        x2 = jnp.pad(x2, ((0, 0), (0, P_pad - P)), constant_values=-jnp.inf)

    in_item = jnp.dtype(x.dtype).itemsize
    out_item = jnp.dtype(out_dtype).itemsize

    # --- row tile selection -------------------------------------------------
    tile = min(row_tile, rows)
    if rows > 8:
        # Guarantee >= 2 grid steps so the parallel axis shards across v7x's
        # two TensorCores (no effect for large inputs where rows >> row_tile).
        tile = min(tile, _round_up(pl.cdiv(rows, 2), 8))
    # Cap so the double-buffered in+out footprint stays under ~12 MiB
    # (fits v5e's 16 MiB scoped-VMEM default without overrides).
    vmem_budget = 12 * 1024 * 1024
    max_tile = max(8, (vmem_budget // (2 * P_pad * (in_item + out_item)) // 8) * 8)
    tile = min(tile, max_tile)
    tile = max(8, _round_up(tile, 8))  # sublane-dim multiple of 8

    grid = pl.cdiv(rows, tile)  # ragged trailing block: OOB writes are masked

    kernel = _monophonic_kernel_exact if exact_ties else _monophonic_kernel_anymax

    out = pl.pallas_call(
        kernel,
        out_shape=jax.ShapeDtypeStruct((rows, P_pad), out_dtype),
        grid_spec=pltpu.PrefetchScalarGridSpec(
            num_scalar_prefetch=0,
            grid=(grid,),
            in_specs=[pl.BlockSpec((tile, P_pad), lambda r: (r, 0))],
            out_specs=pl.BlockSpec((tile, P_pad), lambda r: (r, 0)),
        ),
        compiler_params=pltpu.CompilerParams(
            dimension_semantics=("parallel",),
        ),
        cost_estimate=pl.CostEstimate(
            flops=5 * rows * P_pad,
            transcendentals=0,
            bytes_accessed=rows * P_pad * (in_item + out_item),
        ),
    )(x2)

    if P_pad != P:
        out = out[:, :P]
    return out.reshape(B, T, P)


if __name__ == "__main__":
    # MonophonicLayer has no parameters; only an input is needed.
    key = jax.random.PRNGKey(0)

    # Small shape consistent with the module: (batch, time, pitch); dim=2 is pitch.
    B, T, P = 2, 8, 128
    x = jax.random.normal(key, (B, T, P), dtype=jnp.float32)

    y = jax.block_until_ready(monophonic_layer(x))
    ref = jax.nn.one_hot(jnp.argmax(x, axis=2), P, dtype=x.dtype)
    assert y.shape == x.shape and y.dtype == x.dtype
    assert jnp.allclose(y, ref), "mismatch vs reference one-hot (small case)"
    assert jnp.allclose(jnp.sum(y, axis=2), 1.0), "not monophonic (small case)"

    # Ragged case: rows = 650 -> 2 grid steps, partial (masked-write) trailing block.
    B2, T2 = 5, 130
    x2 = jax.random.normal(jax.random.PRNGKey(1), (B2, T2, P), dtype=jnp.float32)
    y2 = jax.block_until_ready(monophonic_layer(x2))
    ref2 = jax.nn.one_hot(jnp.argmax(x2, axis=2), P, dtype=x2.dtype)
    assert y2.shape == x2.shape
    assert jnp.allclose(y2, ref2), "mismatch vs reference one-hot (ragged rows case)"
    assert jnp.allclose(jnp.sum(y2, axis=2), 1.0), "not monophonic (ragged rows case)"

    # Non-128 pitch axis (e.g. 88 MIDI pitches): exercises the -inf lane padding path.
    B3, T3, P3 = 2, 8, 88
    x3 = jax.random.normal(jax.random.PRNGKey(2), (B3, T3, P3), dtype=jnp.float32)
    y3 = jax.block_until_ready(monophonic_layer(x3))
    ref3 = jax.nn.one_hot(jnp.argmax(x3, axis=2), P3, dtype=x3.dtype)
    assert y3.shape == x3.shape
    assert jnp.allclose(y3, ref3), "mismatch vs reference one-hot (P=88 case)"
    assert jnp.allclose(jnp.sum(y3, axis=2), 1.0), "not monophonic (P=88 case)"

    print("KERNEL_OK")
</pallas_src>

<mosaic_0001>
module attributes {stable_mosaic.version = 11 : i64} {
  func.func @_monophonic_kernel_exact(%arg0: i32, %arg1: memref<8x128xf32, #tpu.memory_space<vmem>>, %arg2: memref<8x128xf32, #tpu.memory_space<vmem>>) attributes {dimension_semantics = [#tpu.dimension_semantics<parallel>], iteration_bounds = array<i64: 2>, scalar_prefetch = 0 : i64, scratch_operands = 0 : i64, tpu.core_type = #tpu.core_type<tc>, window_params = [{transform_indices = @transform_0, window_bounds = array<i64: 8, 128>}, {transform_indices = @transform_1, window_bounds = array<i64: 8, 128>}]} {
    %c0 = arith.constant 0 : index
    %c0_0 = arith.constant 0 : index
    %0 = vector.load %arg1[%c0, %c0_0] : memref<8x128xf32, #tpu.memory_space<vmem>>, vector<8x128xf32>
    %cst = arith.constant dense<0xFF800000> : vector<8xf32>
    %1 = vector.multi_reduction <maximumf>, %0, %cst [1] : vector<8x128xf32> to vector<8xf32>
    %2 = vector.shape_cast %1 : vector<8xf32> to vector<8x1xf32>
    %3 = tpu.iota {dimensions = array<i32: 1>} : vector<8x128xi32>
    %4 = vector.broadcast %2 : vector<8x1xf32> to vector<8x128xf32>
    %5 = arith.cmpf oeq, %0, %4 : vector<8x128xf32>
    %c128_i32 = arith.constant 128 : i32
    %6 = vector.broadcast %c128_i32 : i32 to vector<8x128xi32>
    %7 = arith.select %5, %3, %6 : vector<8x128xi1>, vector<8x128xi32>
    %cst_1 = arith.constant dense<2147483647> : vector<8xi32>
    %8 = vector.multi_reduction <minsi>, %7, %cst_1 [1] : vector<8x128xi32> to vector<8xi32>
    %9 = vector.shape_cast %8 : vector<8xi32> to vector<8x1xi32>
    %10 = vector.broadcast %9 : vector<8x1xi32> to vector<8x128xi32>
    %11 = arith.cmpi eq, %3, %10 : vector<8x128xi32>
    %12 = arith.extui %11 : vector<8x128xi1> to vector<8x128xi32>
    %13 = arith.sitofp %12 : vector<8x128xi32> to vector<8x128xf32>
    %c0_2 = arith.constant 0 : index
    %c0_3 = arith.constant 0 : index
    %14 = vector.load %arg2[%c0_2, %c0_3] : memref<8x128xf32, #tpu.memory_space<vmem>>, vector<8x128xf32>
    tpu.vector_store %arg2[%c0_2, %c0_3], %13 {strides = array<i32>} : memref<8x128xf32, #tpu.memory_space<vmem>>, vector<8x128xf32>,
    return
  }
  func.func @transform_0(%arg0: i32) -> (i32, i32) {
    %c0_i32 = arith.constant 0 : i32
    %c0_i32_0 = arith.constant 0 : i32
    return %arg0, %c0_i32 : i32, i32
  }
  func.func @transform_1(%arg0: i32) -> (i32, i32) {
    %c0_i32 = arith.constant 0 : i32
    %c0_i32_0 = arith.constant 0 : i32
    return %arg0, %c0_i32 : i32, i32
  }
}

</mosaic_0001>

<llo_original>
// kernel: tpu_custom_call.1
$region0: #{tpu_custom_call.1}
  #allocation0 [shape = 'u32[]', space=smem, size = 0x4, offset = 0x4, fixed_abs, tag = 'smem constant byte address 0x4 - core index']
  #allocation1 [shape = 'u32[144,128]{1,0:T(1,128)}', space=vmem, size = 0x12000, scoped, tag = 'internal scratch']
  %s0 = inlined_call_operand.hbm [shape: f32[16,128], index: 0, kind: input, shape index: {}]
  %s1 = inlined_call_operand.hbm [shape: f32[16,128], index: 1, kind: output, shape index: {}]
  %s2 = sld [smem:[#allocation0]]
  $region41: #{tpu_custom_call.1} parent=0
    _
  %s4 = ssub.s32 1, %s2
  %s5 = scalar_select 0, %s4, %s2
  $region1: #{tpu_custom_call.1} parent=0
    #allocation2 [shape = 'u8[8192]{0}', space=vmem, size = 0x2000, scoped, tag = 'input window, operand 0']
    #allocation3 [shape = 's32[2]{0}', space=sflag, size = 0x8, scoped, tag = 'scoped memory for tpu_custom_call.1']
    #allocation4 [shape = 's32[2]{0}', space=sflag, size = 0x8, scoped, tag = 'scoped memory for tpu_custom_call.1']
    #allocation5 [shape = 'u8[8192]{0}', space=vmem, size = 0x2000, scoped, tag = 'output window, operand 0']
    %6 = vsyncpa [#allocation3], 0
    %s7 = scalar_lea.sflag [#allocation3], 1
    %8 = vsyncpa %s7, 0
    %9 = vsyncpa [#allocation4], 0
    %s10 = scalar_lea.sflag [#allocation4], 1
    %11 = vsyncpa %s10, 0
    loop: start=0, step=1, limit=4
    $region2: #{tpu_custom_call.1} parent=1 // loop_pre_header
      _
    $region3: #{tpu_custom_call.1} parent=1 // loop_header
      %s13 = sphi 0, %s17
      %p14 = scmp.ge.s32.totalorder %s13, 4
      %s23 = sphi 0, %s25
      %s26 = sphi 0, %s23
      %s27 = sphi 0, %s26
      %s43 = sphi 0, %s27
      %s49 = sphi 0, %s51
      %s52 = sphi 0, %s49
      %s53 = sphi 0, %s52
      %s69 = sphi 0, %s53
    $region4: #{tpu_custom_call.1} parent=1 // loop_header_branch
      %16 = sbr.rel (%p14) target = $region8
    $region5: #{tpu_custom_call.1} parent=1 // loop_body
      %s18 = ssub.s32 %s13, 1
      %s19 = ssub.s32 %s13, 2
      %s20 = sadd.s32 %s13, 1
      %s21 = ssub.s32 %s13, %s20
      %p22 = scmp.eq.s32.totalorder %s21, 0
      %s24 = sadd.s32 %s23, 1
      %s25 = scalar_select %p22, %s23, %s24
      %p28 = pneg %p22
      %p29 = scmp.eq.s32.totalorder %s13, 1
      %p30 = por %p28, %p29
      %p31 = scmp.ne.s32.totalorder %s23, %s26
      %p32 = scmp.eq.s32.totalorder %s13, 0
      %p33 = por %p31, %p32
      %p34 = scmp.ne.s32.totalorder %s23, %s26
      %p35 = scmp.eq.s32.totalorder %s18, 1
      %p36 = por %p34, %p35
      %p37 = scmp.ne.s32.totalorder %s26, %s27
      %p38 = scmp.eq.s32.totalorder %s18, 0
      %p39 = por %p37, %p38
      %p40 = scmp.ne.s32.totalorder %s26, %s27
      %p41 = scmp.eq.s32.totalorder %s19, 1
      %p42 = por %p40, %p41
      %p44 = scmp.ne.s32.totalorder %s27, %s43
      %p45 = scmp.eq.s32.totalorder %s19, 0
      %p46 = por %p44, %p45
      %s47 = ssub.s32 %s13, %s20
      %p48 = scmp.eq.s32.totalorder %s47, 0
      %s50 = sadd.s32 %s49, 1
      %s51 = scalar_select %p48, %s49, %s50
      %p54 = pneg %p48
      %p55 = scmp.eq.s32.totalorder %s13, 1
      %p56 = por %p54, %p55
      %p57 = scmp.ne.s32.totalorder %s49, %s52
      %p58 = scmp.eq.s32.totalorder %s13, 0
      %p59 = por %p57, %p58
      %p60 = scmp.ne.s32.totalorder %s49, %s52
      %p61 = scmp.eq.s32.totalorder %s18, 1
      %p62 = por %p60, %p61
      %p63 = scmp.ne.s32.totalorder %s52, %s53
      %p64 = scmp.eq.s32.totalorder %s18, 0
      %p65 = por %p63, %p64
      %p66 = scmp.ne.s32.totalorder %s52, %s53
      %p67 = scmp.eq.s32.totalorder %s19, 1
      %p68 = por %p66, %p67
      %p70 = scmp.ne.s32.totalorder %s53, %s69
      %p71 = scmp.eq.s32.totalorder %s19, 0
      %p72 = por %p70, %p71
      %p73 = scmp.le.s32.totalorder 1, %s13
      %p74 = scmp.lt.s32.totalorder %s13, 3
      %p75 = pnand %p73, %p74
      %p76 = pneg %p75
      // Predicated region
      $region9: #{tpu_custom_call.1} parent=5 // pred_check
        _
      $region10: #{tpu_custom_call.1} parent=5 // pred_check_branch
        %78 = sbr.rel (%p75) target = $region12
      $region11: #{tpu_custom_call.1} parent=5 // pred_region
        %s79 = ssub.s32 %s13, 1
      $region12: #{tpu_custom_call.1} parent=5 // pred_fallthru
        _
      %p80 = scmp.lt.s32.totalorder %s13, 2
      // Predicated region
      $region13: #{tpu_custom_call.1} parent=5 // pred_check
        %p81 = pneg %p80
      $region14: #{tpu_custom_call.1} parent=5 // pred_check_branch
        %83 = sbr.rel (%p81) target = $region16
      $region15: #{tpu_custom_call.1} parent=5 // pred_region
        // Predicated region
        $region17: #{tpu_custom_call.1} parent=15 // pred_check
          %p84 = pneg %p33
        $region18: #{tpu_custom_call.1} parent=15 // pred_check_branch
          %86 = sbr.rel (%p84) target = $region20
        $region19: #{tpu_custom_call.1} parent=15 // pred_region
          %s87 = sand.u32 %s23, 1
          %s88 = scalar_lea.sflag [#allocation3], %s87
          %s89 = sand.u32 %s23, 1
          %s90 = smul.addr %s89, 8
          %s91 = scalar_lea.vmem [#allocation2], %s90
          %s93 = ssub.s32 128, 128
          %94 = vsyncadd %s88, %s93
          %s95 = smul.addr %s13, 128
          %s96 = scalar_lea.hbm %s0, %s95
          %s98 = sshll.u32 %s91, 4
          %s99 = int_to_ptr.vmem [resolvable:$true] %s98
          %101 = dma.hbm_to_vmem [thread:$0]  %s96, 128, %s99, %s88
        $region20: #{tpu_custom_call.1} parent=15 // pred_fallthru
          _
      $region16: #{tpu_custom_call.1} parent=5 // pred_fallthru
        _
      %p102 = scmp.le.s32.totalorder 1, %s13
      %p103 = scmp.lt.s32.totalorder %s13, 3
      %p104 = pnand %p102, %p103
      %p105 = pneg %p104
      // Predicated region
      $region21: #{tpu_custom_call.1} parent=5 // pred_check
        _
      $region22: #{tpu_custom_call.1} parent=5 // pred_check_branch
        %107 = sbr.rel (%p104) target = $region24
      $region23: #{tpu_custom_call.1} parent=5 // pred_region
        %s108 = ssub.s32 %s13, 1
        %s109 = sand.u32 %s26, 1
        %s110 = scalar_lea.sflag [#allocation3], %s109
        %s111 = sand.u32 %s26, 1
        %s112 = smul.addr %s111, 8
        %s113 = scalar_lea.vmem [#allocation2], %s112
        // Predicated region
        $region25: #{tpu_custom_call.1} parent=23 // pred_check
          %p114 = pneg %p39
        $region26: #{tpu_custom_call.1} parent=23 // pred_check_branch
          %116 = sbr.rel (%p114) target = $region28
        $region27: #{tpu_custom_call.1} parent=23 // pred_region
          %117 = dma.done %s110, 128
        $region28: #{tpu_custom_call.1} parent=23 // pred_fallthru
          _
        %s118 = sand.u32 %s26, 1
        %s119 = scalar_lea.sflag [#allocation3], %s118
        %s120 = sand.u32 %s26, 1
        %s121 = smul.addr %s120, 8
        %s122 = scalar_lea.vmem [#allocation2], %s121
        %p123 = pneg %p39
        %p124 = pneg %p36
        %p125 = pneg %p65
        %p126 = pneg %p62
        %s127 = sand.u32 %s52, 1
        %s128 = scalar_lea.sflag [#allocation4], %s127
        %s129 = sand.u32 %s52, 1
        %s130 = smul.addr %s129, 8
        %s131 = scalar_lea.vmem [#allocation5], %s130
        %v132 = vld [vmem:[%s113] sm:$0xff]
        %133 = vmax.xlane.f32.xlu0 %v132
        %v134 = vpop.xlane.xlu0 %133
        %v135 = vlaneseq
        %v136 = vand.u32 %v135, 127
        %vm137 = vcmp.eq.f32.partialorder %v132, %v134
        %v138 = vsel %vm137, %v136, 128
        %v139 = vand.u32 %v138, 65535
        %v140 = vshra.s32 %v138, 16
        %v141 = vcvt.s32.f32 %v139
        %v142 = vcvt.s32.f32 %v140
        %143 = vmin.xlane.f32.xlu0 %v142
        %v144 = vpop.xlane.xlu0 %143
        %vm145 = vcmp.eq.f32.partialorder %v142, %v144
        %v146 = vsel %vm145, %v141, inf
        %147 = vmin.xlane.f32.xlu0 %v146
        %v148 = vpop.xlane.xlu0 %147
        %v149 = vcvt.f32.s32 %v148
        %v150 = vcvt.f32.s32 %v144
        %v151 = vshll.u32 %v150, 16
        %v152 = vadd.s32 %v151, %v149
        %vm153 = vcmp.eq.s32.totalorder %v136, %v152
        %v154 = vsel %vm153, 1, 0
        %v155 = vcvt.s32.f32 %v154
        %156 = vst [vmem:[%s131] sm:$0xff] %v155
        %s157 = sand.u32 %s52, 1
        %s158 = scalar_lea.sflag [#allocation4], %s157
        %s159 = sand.u32 %s52, 1
        %s160 = smul.addr %s159, 8
        %s161 = scalar_lea.vmem [#allocation5], %s160
        // Predicated region
        $region29: #{tpu_custom_call.1} parent=23 // pred_check
          %p162 = pneg %p62
        $region30: #{tpu_custom_call.1} parent=23 // pred_check_branch
          %164 = sbr.rel (%p162) target = $region32
        $region31: #{tpu_custom_call.1} parent=23 // pred_region
          %s166 = ssub.s32 128, 128
          %167 = vsyncadd %s158, %s166
          %s168 = smul.addr %s18, 128
          %s169 = scalar_lea.hbm %s1, %s168
          %s171 = sshll.u32 %s161, 4
          %s172 = int_to_ptr.vmem [resolvable:$true] %s171
          %174 = dma.vmem_to_hbm [thread:$0]  %s172, 128, %s169, %s158
        $region32: #{tpu_custom_call.1} parent=23 // pred_fallthru
          _
      $region24: #{tpu_custom_call.1} parent=5 // pred_fallthru
        _
      %p175 = scmp.le.s32.totalorder 2, %s13
      // Predicated region
      $region33: #{tpu_custom_call.1} parent=5 // pred_check
        %p176 = pneg %p175
      $region34: #{tpu_custom_call.1} parent=5 // pred_check_branch
        %178 = sbr.rel (%p176) target = $region36
      $region35: #{tpu_custom_call.1} parent=5 // pred_region
        %s179 = ssub.s32 %s13, 2
        // Predicated region
        $region37: #{tpu_custom_call.1} parent=35 // pred_check
          %p180 = pneg %p68
        $region38: #{tpu_custom_call.1} parent=35 // pred_check_branch
          %182 = sbr.rel (%p180) target = $region40
        $region39: #{tpu_custom_call.1} parent=35 // pred_region
          %s183 = sand.u32 %s53, 1
          %s184 = scalar_lea.sflag [#allocation4], %s183
          %s185 = sand.u32 %s53, 1
          %s186 = smul.addr %s185, 8
          %s187 = scalar_lea.vmem [#allocation5], %s186
          %188 = dma.done %s184, 128
        $region40: #{tpu_custom_call.1} parent=35 // pred_fallthru
          _
      $region36: #{tpu_custom_call.1} parent=5 // pred_fallthru
        _
    $region6: #{tpu_custom_call.1} parent=1 // loop_footer
      %s17 = sadd.s32 1, %s13
    $region7: #{tpu_custom_call.1} parent=1 // loop_footer_branch
      %12 = sbr.rel target = $region3
    $region8: #{tpu_custom_call.1} parent=1 // loop_exit
      _
    %189 = vsyncpa [#allocation3], 1
    %s190 = scalar_lea.sflag [#allocation3], 1
    %191 = vsyncpa %s190, 1
    %192 = vsyncpa [#allocation4], 1
    %s193 = scalar_lea.sflag [#allocation4], 1
    %194 = vsyncpa %s193, 1

</llo_original>
